<compile_context>
chip_gen: v7x
topology: tpu7x:2x2x1
jax: 0.10.0
libtpu: 0.0.40
codegen_flags: <defaults>
</compile_context>

<pallas_src>
import functools

import jax
import jax.numpy as jnp
from jax.experimental import pallas as pl
from jax.experimental.pallas import tpu as pltpu


NEG_BIAS = -1e30  # bias for padded vocab columns -> exp() underflows to 0.


def _round_up(n, m):
    return ((n + m - 1) // m) * m


@functools.lru_cache(maxsize=1)
def _device_caps():
    """Best-effort per-chip tile / VMEM-budget defaults."""
    kind = ""
    try:
        kind = jax.devices()[0].device_kind.lower()
    except Exception:  # defensive: fall back to conservative defaults
        pass
    if "v7" in kind or "7x" in kind:
        # 64 MiB VMEM, 2 TensorCores: smaller tn, split small batches in two.
        return {"tm": 512, "tn": 1024, "vmem_cap": 56 << 20, "row_split": 2}
    if "v6" in kind:
        # 128 MiB VMEM, fast MXU: big tiles, generous VMEM budget.
        return {"tm": 512, "tn": 2048, "vmem_cap": 100 << 20, "row_split": 1}
    if "v5e" in kind or "v5 lite" in kind or "v5lite" in kind:
        # Slower MXU: tm=256 is already near the compute/BW balance point.
        return {"tm": 256, "tn": 2048, "vmem_cap": 96 << 20, "row_split": 1}
    # Unknown chip: conservative budget.
    return {"tm": 256, "tn": 1024, "vmem_cap": 48 << 20, "row_split": 1}


def _vmem_limit(need_bytes, cap_bytes):
    """Size vmem_limit_bytes from the actual tile footprint, with headroom."""
    want = need_bytes + max(need_bytes // 2, 8 << 20)
    return int(min(cap_bytes, max(32 << 20, want)))


# ---------------------------------------------------------------------------
# Pass 1: logits tiles + per-row log-sum-exp (online, over the vocab axis).
# ---------------------------------------------------------------------------
def _logits_lse_kernel(x_ref, w_ref, b_ref, logits_ref, lse_ref, m_sc, l_sc):
    j = pl.program_id(1)

    @pl.when(j == 0)
    def _init():
        m_sc[...] = jnp.full(m_sc.shape, -jnp.inf, dtype=jnp.float32)
        l_sc[...] = jnp.zeros(l_sc.shape, dtype=jnp.float32)

    # (tm, d_model) @ (d_model, tn) on the MXU with f32 accumulation.
    logits = jnp.dot(x_ref[...], w_ref[...], preferred_element_type=jnp.float32)
    logits = logits + b_ref[...]  # bias is f32, (1, tn) broadcast

    # Online max / sum-exp update of the running log-sum-exp (per row).
    m_prev = m_sc[...]
    m_new = jnp.maximum(m_prev, jnp.max(logits, axis=-1, keepdims=True))
    l_sc[...] = l_sc[...] * jnp.exp(m_prev - m_new) + jnp.sum(
        jnp.exp(logits - m_new), axis=-1, keepdims=True)
    m_sc[...] = m_new

    # Write this (tm, tn) logits tile straight back (f32 staging in HBM).
    logits_ref[...] = logits

    # Last vocab tile for this row block: emit the per-row log-sum-exp.
    @pl.when(j == pl.num_programs(1) - 1)
    def _finalize():
        lse_ref[...] = m_sc[...] + jnp.log(l_sc[...])


# ---------------------------------------------------------------------------
# Pass 2: streaming normalization  out = logits - lse  (cast to out dtype).
# ---------------------------------------------------------------------------
def _normalize_kernel(logits_ref, lse_ref, o_ref):
    o_ref[...] = (logits_ref[...] - lse_ref[...]).astype(o_ref.dtype)


# ---------------------------------------------------------------------------
# One-time parameter preparation (do NOT call per forward step).
# ---------------------------------------------------------------------------
def prepare_generator_params(weight, bias, *, tn=None, compute_dtype=jnp.bfloat16):
    """weight: (vocab, d_model) as in nn.Linear; bias: (vocab,).

    Returns (w_t, b_row, vocab, tn) with
      w_t:   (d_model, vocab_padded) in compute_dtype (already transposed)
      b_row: (1, vocab_padded) in f32 (padded cols get a huge negative bias).
    """
    vocab, d_model = weight.shape
    caps = _device_caps()
    if tn is None:
        tn = caps["tn"]
        # Keep the double-buffered weight tile within ~1/3 of the VMEM budget
        # (this also covers d_model >= 8192 without a K grid axis).
        wbytes = jnp.dtype(compute_dtype).itemsize
        while tn > 512 and 2 * d_model * tn * wbytes > caps["vmem_cap"] // 3:
            tn //= 2
    tn = min(int(tn), _round_up(vocab, 128))
    v_pad = _round_up(vocab, tn)
    w_t = weight.T.astype(compute_dtype)
    b = bias.astype(jnp.float32)
    if v_pad != vocab:
        w_t = jnp.pad(w_t, ((0, 0), (0, v_pad - vocab)))
        b = jnp.pad(b, (0, v_pad - vocab), constant_values=NEG_BIAS)
    return w_t, b.reshape(1, v_pad), vocab, tn


# ---------------------------------------------------------------------------
# Forward: log_softmax(x @ W^T + b, axis=-1) == Generator.forward(x).
# ---------------------------------------------------------------------------
@functools.partial(jax.jit, static_argnames=("vocab", "tn", "tm", "out_dtype"))
def _generator_forward_impl(x, w_t, b_row, *, vocab, tn, tm, out_dtype):
    caps = _device_caps()
    if tm is None:
        tm = caps["tm"]

    d_model = x.shape[-1]
    v_pad = w_t.shape[1]
    assert v_pad % tn == 0
    lead = x.shape[:-1]

    # bf16 activations for the MXU; all softmax math is f32 in-kernel.
    x2d = x.reshape(-1, d_model).astype(w_t.dtype)
    n_rows = x2d.shape[0]

    # Row tile: multiple of 16 (bf16 packs 2 rows / sublane).  For small inputs
    # optionally split into >=2 row tiles so both v7x TensorCores get work.
    n16 = _round_up(n_rows, 16)
    if n16 <= tm:
        if caps["row_split"] > 1 and n16 > 16:
            tm_eff = _round_up(-(-n_rows // caps["row_split"]), 16)
        else:
            tm_eff = n16
    else:
        tm_eff = tm
    r_pad = _round_up(n_rows, tm_eff)
    if r_pad != n_rows:
        x2d = jnp.pad(x2d, ((0, r_pad - n_rows), (0, 0)))

    grid = (r_pad // tm_eff, v_pad // tn)
    out_bytes = jnp.dtype(out_dtype).itemsize
    wbytes = jnp.dtype(w_t.dtype).itemsize

    # ---- Pass 1: logits (f32 staging) + per-row LSE --------------------------
    need1 = 2 * (tm_eff * d_model * wbytes      # x tile (double-buffered)
                 + d_model * tn * wbytes        # weight tile
                 + tn * 4                       # bias tile
                 + tm_eff * tn * 4              # logits out tile
                 + tm_eff * 4)                  # lse out tile
    need1 += 2 * tm_eff * 4                     # m / l scratch
    logits_f32, lse = pl.pallas_call(
        _logits_lse_kernel,
        out_shape=(jax.ShapeDtypeStruct((r_pad, v_pad), jnp.float32),
                   jax.ShapeDtypeStruct((r_pad, 1), jnp.float32)),
        grid_spec=pltpu.PrefetchScalarGridSpec(
            num_scalar_prefetch=0,
            grid=grid,
            in_specs=[
                # x row tile: constant over the vocab axis.
                pl.BlockSpec((tm_eff, d_model), lambda i, j: (i, 0)),
                # weight streams one (d_model, tn) tile per step.
                pl.BlockSpec((d_model, tn), lambda i, j: (0, j)),
                # f32 bias tile.
                pl.BlockSpec((1, tn), lambda i, j: (0, j)),
            ],
            out_specs=[
                # Per-(i, j) lane-dense logits tile -- NOT resident over vocab.
                pl.BlockSpec((tm_eff, tn), lambda i, j: (i, j)),
                # Per-row LSE, written on the last vocab step.
                pl.BlockSpec((tm_eff, 1), lambda i, j: (i, 0)),
            ],
            scratch_shapes=[
                pltpu.VMEM((tm_eff, 1), jnp.float32),   # running max
                pltpu.VMEM((tm_eff, 1), jnp.float32),   # running sum-exp
            ],
        ),
        compiler_params=pltpu.CompilerParams(
            # Vocab axis MUST stay innermost + sequential for the online LSE.
            dimension_semantics=("parallel", "arbitrary"),
            vmem_limit_bytes=_vmem_limit(need1, caps["vmem_cap"]),
        ),
    )(x2d, w_t, b_row)

    # ---- Pass 2: streaming normalization --------------------------------------
    need2 = 2 * (tm_eff * tn * 4 + tm_eff * 4 + tm_eff * tn * out_bytes)
    alias = ({0: 0} if jnp.dtype(out_dtype) == jnp.dtype(jnp.float32) else {})
    out = pl.pallas_call(
        _normalize_kernel,
        out_shape=jax.ShapeDtypeStruct((r_pad, v_pad), out_dtype),
        grid_spec=pltpu.PrefetchScalarGridSpec(
            num_scalar_prefetch=0,
            grid=grid,
            in_specs=[
                pl.BlockSpec((tm_eff, tn), lambda i, j: (i, j)),
                pl.BlockSpec((tm_eff, 1), lambda i, j: (i, 0)),
            ],
            out_specs=pl.BlockSpec((tm_eff, tn), lambda i, j: (i, j)),
        ),
        compiler_params=pltpu.CompilerParams(
            dimension_semantics=("parallel", "parallel"),
            vmem_limit_bytes=_vmem_limit(need2, caps["vmem_cap"]),
        ),
        input_output_aliases=alias,   # in-place when out dtype == f32 (P8)
    )(logits_f32, lse)

    out = out[:n_rows, :vocab]
    return out.reshape(*lead, vocab)


def generator_forward(x, w_t, b_row, vocab, *, tn, tm=None, out_dtype=None):
    """log_softmax(x @ W^T + b, axis=-1).  x: (..., d_model)."""
    out_dtype = jnp.dtype(x.dtype if out_dtype is None else out_dtype)
    return _generator_forward_impl(
        x, w_t, b_row, vocab=int(vocab), tn=int(tn),
        tm=None if tm is None else int(tm), out_dtype=out_dtype)


if __name__ == "__main__":
    # Small shapes consistent with the module: (batch, seq, d_model) -> vocab.
    batch, seq, d_model, vocab = 2, 8, 32, 128

    key = jax.random.PRNGKey(0)
    kx, kw, kb = jax.random.split(key, 3)

    x = jax.random.normal(kx, (batch, seq, d_model), dtype=jnp.float32)
    bound = 1.0 / (d_model ** 0.5)
    weight = jax.random.uniform(
        kw, (vocab, d_model), minval=-bound, maxval=bound, dtype=jnp.float32)
    bias = jax.random.uniform(
        kb, (vocab,), minval=-bound, maxval=bound, dtype=jnp.float32)

    # One-time parameter prep (transpose + bf16 cast + vocab padding).
    w_t, b_row, vocab_sz, tn = prepare_generator_params(weight, bias)

    out = generator_forward(x, w_t, b_row, vocab_sz, tn=tn)
    out = jax.block_until_ready(out)
    assert out.shape == (batch, seq, vocab)

    # Reference (plain JAX) using the same bf16-rounded inputs + f32 accumulation.
    def ref_logsoftmax(xr, wr, br):
        xb = xr.astype(jnp.bfloat16).astype(jnp.float32)
        wb = wr.astype(jnp.bfloat16).astype(jnp.float32)
        logits = jnp.dot(
            xb.reshape(-1, xr.shape[-1]), wb.T,
            precision=jax.lax.Precision.HIGHEST) + br
        return jax.nn.log_softmax(logits, axis=-1).reshape(
            *xr.shape[:-1], wr.shape[0])

    ref = ref_logsoftmax(x, weight, bias)
    assert jnp.allclose(out, ref, atol=1e-4, rtol=1e-4), (
        float(jnp.max(jnp.abs(out - ref))))

    # Check 2: ragged rows + padded vocab + multiple vocab tiles (exercises the
    # online log-sum-exp, padded-column masking and row padding).
    b2, s2, v2 = 2, 5, 352
    x2 = jax.random.normal(kx, (b2, s2, d_model), dtype=jnp.float32)
    w2 = jax.random.uniform(
        kw, (v2, d_model), minval=-bound, maxval=bound, dtype=jnp.float32)
    bb2 = jax.random.uniform(
        kb, (v2,), minval=-bound, maxval=bound, dtype=jnp.float32)
    w_t2, b_row2, vsz2, tn2 = prepare_generator_params(w2, bb2, tn=128)
    out2 = jax.block_until_ready(
        generator_forward(x2, w_t2, b_row2, vsz2, tn=tn2))
    ref2 = ref_logsoftmax(x2, w2, bb2)
    assert out2.shape == (b2, s2, v2)
    assert jnp.allclose(out2, ref2, atol=1e-4, rtol=1e-4), (
        float(jnp.max(jnp.abs(out2 - ref2))))

    # Check 3: bf16 output path (precision-safe because the pre-normalization
    # logits are staged in f32).
    out3 = jax.block_until_ready(
        generator_forward(x, w_t, b_row, vocab_sz, tn=tn,
                          out_dtype=jnp.bfloat16))
    assert out3.dtype == jnp.bfloat16
    assert jnp.allclose(out3.astype(jnp.float32), ref, atol=5e-2, rtol=5e-2), (
        float(jnp.max(jnp.abs(out3.astype(jnp.float32) - ref))))

    print("KERNEL_OK")
</pallas_src>

<mosaic_0001>
module attributes {stable_mosaic.version = 11 : i64} {
  func.func @_normalize_kernel(%arg0: i32, %arg1: i32, %arg2: memref<16x128xf32, #tpu.memory_space<vmem>>, %arg3: memref<16x1xf32, #tpu.memory_space<vmem>>, %arg4: memref<16x128xf32, #tpu.memory_space<vmem>>) attributes {dimension_semantics = [#tpu.dimension_semantics<parallel>, #tpu.dimension_semantics<parallel>], iteration_bounds = array<i64: 1, 1>, scalar_prefetch = 0 : i64, scratch_operands = 0 : i64, tpu.core_type = #tpu.core_type<tc>, window_params = [{transform_indices = @transform_0, window_bounds = array<i64: 16, 128>}, {transform_indices = @transform_1, window_bounds = array<i64: 16, 1>}, {transform_indices = @transform_2, window_bounds = array<i64: 16, 128>}]} {
    %c0 = arith.constant 0 : index
    %c0_0 = arith.constant 0 : index
    %0 = vector.load %arg2[%c0, %c0_0] : memref<16x128xf32, #tpu.memory_space<vmem>>, vector<16x128xf32>
    %c0_1 = arith.constant 0 : index
    %c0_2 = arith.constant 0 : index
    %1 = vector.load %arg3[%c0_1, %c0_2] : memref<16x1xf32, #tpu.memory_space<vmem>>, vector<16x1xf32>
    %2 = vector.broadcast %1 : vector<16x1xf32> to vector<16x128xf32>
    %3 = arith.subf %0, %2 : vector<16x128xf32>
    %c0_3 = arith.constant 0 : index
    %c0_4 = arith.constant 0 : index
    %4 = vector.load %arg4[%c0_3, %c0_4] : memref<16x128xf32, #tpu.memory_space<vmem>>, vector<16x128xf32>
    tpu.vector_store %arg4[%c0_3, %c0_4], %3 {strides = array<i32>} : memref<16x128xf32, #tpu.memory_space<vmem>>, vector<16x128xf32>,
    return
  }
  func.func @transform_0(%arg0: i32, %arg1: i32) -> (i32, i32) {
    %c0_i32 = arith.constant 0 : i32
    return %arg0, %arg1 : i32, i32
  }
  func.func @transform_1(%arg0: i32, %arg1: i32) -> (i32, i32) {
    %c0_i32 = arith.constant 0 : i32
    %c0_i32_0 = arith.constant 0 : i32
    return %arg0, %c0_i32 : i32, i32
  }
  func.func @transform_2(%arg0: i32, %arg1: i32) -> (i32, i32) {
    %c0_i32 = arith.constant 0 : i32
    return %arg0, %arg1 : i32, i32
  }
}

module attributes {stable_mosaic.version = 11 : i64} {
  func.func @_logits_lse_kernel(%arg0: i32, %arg1: i32, %arg2: memref<16x32xbf16, #tpu.memory_space<vmem>>, %arg3: memref<32x128xbf16, #tpu.memory_space<vmem>>, %arg4: memref<1x128xf32, #tpu.memory_space<vmem>>, %arg5: memref<16x128xf32, #tpu.memory_space<vmem>>, %arg6: memref<16x1xf32, #tpu.memory_space<vmem>>, %arg7: memref<16x1xf32, #tpu.memory_space<vmem>>, %arg8: memref<16x1xf32, #tpu.memory_space<vmem>>) attributes {dimension_semantics = [#tpu.dimension_semantics<parallel>, #tpu.dimension_semantics<arbitrary>], iteration_bounds = array<i64: 1, 1>, scalar_prefetch = 0 : i64, scratch_operands = 2 : i64, tpu.core_type = #tpu.core_type<tc>, window_params = [{transform_indices = @transform_0, window_bounds = array<i64: 16, 32>}, {transform_indices = @transform_1, window_bounds = array<i64: 32, 128>}, {transform_indices = @transform_2, window_bounds = array<i64: 1, 128>}, {transform_indices = @transform_3, window_bounds = array<i64: 16, 128>}, {transform_indices = @transform_4, window_bounds = array<i64: 16, 1>}]} {
    %c0_i32 = arith.constant 0 : i32
    %0 = arith.cmpi eq, %arg1, %c0_i32 : i32
    %1 = arith.extui %0 : i1 to i32
    %c0_i32_0 = arith.constant 0 : i32
    %2 = arith.cmpi ne, %1, %c0_i32_0 : i32
    scf.if %2 {
      %cst_20 = arith.constant 0xFF800000 : f32
      %29 = vector.broadcast %cst_20 : f32 to vector<16x1xf32>
      %c0_21 = arith.constant 0 : index
      %c0_22 = arith.constant 0 : index
      %30 = vector.load %arg7[%c0_21, %c0_22] : memref<16x1xf32, #tpu.memory_space<vmem>>, vector<16x1xf32>
      tpu.vector_store %arg7[%c0_21, %c0_22], %29 {strides = array<i32>} : memref<16x1xf32, #tpu.memory_space<vmem>>, vector<16x1xf32>,
      %cst_23 = arith.constant 0.000000e+00 : f32
      %31 = vector.broadcast %cst_23 : f32 to vector<16x1xf32>
      %c0_24 = arith.constant 0 : index
      %c0_25 = arith.constant 0 : index
      %32 = vector.load %arg8[%c0_24, %c0_25] : memref<16x1xf32, #tpu.memory_space<vmem>>, vector<16x1xf32>
      tpu.vector_store %arg8[%c0_24, %c0_25], %31 {strides = array<i32>} : memref<16x1xf32, #tpu.memory_space<vmem>>, vector<16x1xf32>,
    } else {
    }
    %c0 = arith.constant 0 : index
    %c0_1 = arith.constant 0 : index
    %3 = vector.load %arg2[%c0, %c0_1] : memref<16x32xbf16, #tpu.memory_space<vmem>>, vector<16x32xbf16>
    %c0_2 = arith.constant 0 : index
    %c0_3 = arith.constant 0 : index
    %4 = vector.load %arg3[%c0_2, %c0_3] : memref<32x128xbf16, #tpu.memory_space<vmem>>, vector<32x128xbf16>
    %cst = arith.constant dense<0.000000e+00> : vector<16x128xf32>
    %5 = tpu.matmul %3, %4, %cst {dimension_numbers = #tpu.dot_dimension_numbers<[1], [0], [0], [1], [0, 0, 1, 1], [], []>} : vector<16x32xbf16>, vector<32x128xbf16>, vector<16x128xf32> -> vector<16x128xf32>
    %c0_4 = arith.constant 0 : index
    %c0_5 = arith.constant 0 : index
    %6 = vector.load %arg4[%c0_4, %c0_5] : memref<1x128xf32, #tpu.memory_space<vmem>>, vector<1x128xf32>
    %7 = vector.broadcast %6 : vector<1x128xf32> to vector<16x128xf32>
    %8 = arith.addf %5, %7 : vector<16x128xf32>
    %c0_6 = arith.constant 0 : index
    %c0_7 = arith.constant 0 : index
    %9 = vector.load %arg7[%c0_6, %c0_7] : memref<16x1xf32, #tpu.memory_space<vmem>>, vector<16x1xf32>
    %cst_8 = arith.constant dense<0xFF800000> : vector<16xf32>
    %10 = vector.multi_reduction <maximumf>, %8, %cst_8 [1] : vector<16x128xf32> to vector<16xf32>
    %11 = vector.shape_cast %10 : vector<16xf32> to vector<16x1xf32>
    %12 = arith.maximumf %9, %11 : vector<16x1xf32>
    %c0_9 = arith.constant 0 : index
    %c0_10 = arith.constant 0 : index
    %13 = vector.load %arg8[%c0_9, %c0_10] : memref<16x1xf32, #tpu.memory_space<vmem>>, vector<16x1xf32>
    %14 = arith.subf %9, %12 : vector<16x1xf32>
    %15 = math.exp %14 : vector<16x1xf32>
    %16 = arith.mulf %13, %15 : vector<16x1xf32>
    %17 = vector.broadcast %12 : vector<16x1xf32> to vector<16x128xf32>
    %18 = arith.subf %8, %17 : vector<16x128xf32>
    %19 = math.exp %18 : vector<16x128xf32>
    %cst_11 = arith.constant dense<0.000000e+00> : vector<16xf32>
    %20 = vector.multi_reduction <add>, %19, %cst_11 [1] : vector<16x128xf32> to vector<16xf32>
    %21 = vector.shape_cast %20 : vector<16xf32> to vector<16x1xf32>
    %22 = arith.addf %16, %21 : vector<16x1xf32>
    %c0_12 = arith.constant 0 : index
    %c0_13 = arith.constant 0 : index
    %23 = vector.load %arg8[%c0_12, %c0_13] : memref<16x1xf32, #tpu.memory_space<vmem>>, vector<16x1xf32>
    tpu.vector_store %arg8[%c0_12, %c0_13], %22 {strides = array<i32>} : memref<16x1xf32, #tpu.memory_space<vmem>>, vector<16x1xf32>,
    %c0_14 = arith.constant 0 : index
    %c0_15 = arith.constant 0 : index
    %24 = vector.load %arg7[%c0_14, %c0_15] : memref<16x1xf32, #tpu.memory_space<vmem>>, vector<16x1xf32>
    tpu.vector_store %arg7[%c0_14, %c0_15], %12 {strides = array<i32>} : memref<16x1xf32, #tpu.memory_space<vmem>>, vector<16x1xf32>,
    %c0_16 = arith.constant 0 : index
    %c0_17 = arith.constant 0 : index
    %25 = vector.load %arg5[%c0_16, %c0_17] : memref<16x128xf32, #tpu.memory_space<vmem>>, vector<16x128xf32>
    tpu.vector_store %arg5[%c0_16, %c0_17], %8 {strides = array<i32>} : memref<16x128xf32, #tpu.memory_space<vmem>>, vector<16x128xf32>,
    %c0_i32_18 = arith.constant 0 : i32
    %26 = arith.cmpi eq, %arg1, %c0_i32_18 : i32
    %27 = arith.extui %26 : i1 to i32
    %c0_i32_19 = arith.constant 0 : i32
    %28 = arith.cmpi ne, %27, %c0_i32_19 : i32
    scf.if %28 {
      %c0_20 = arith.constant 0 : index
      %c0_21 = arith.constant 0 : index
      %29 = vector.load %arg7[%c0_20, %c0_21] : memref<16x1xf32, #tpu.memory_space<vmem>>, vector<16x1xf32>
      %c0_22 = arith.constant 0 : index
      %c0_23 = arith.constant 0 : index
      %30 = vector.load %arg8[%c0_22, %c0_23] : memref<16x1xf32, #tpu.memory_space<vmem>>, vector<16x1xf32>
      %31 = math.log %30 : vector<16x1xf32>
      %32 = arith.addf %29, %31 : vector<16x1xf32>
      %c0_24 = arith.constant 0 : index
      %c0_25 = arith.constant 0 : index
      %33 = vector.load %arg6[%c0_24, %c0_25] : memref<16x1xf32, #tpu.memory_space<vmem>>, vector<16x1xf32>
      tpu.vector_store %arg6[%c0_24, %c0_25], %32 {strides = array<i32>} : memref<16x1xf32, #tpu.memory_space<vmem>>, vector<16x1xf32>,
    } else {
    }
    return
  }
  func.func @transform_0(%arg0: i32, %arg1: i32) -> (i32, i32) {
    %c0_i32 = arith.constant 0 : i32
    %c0_i32_0 = arith.constant 0 : i32
    return %arg0, %c0_i32 : i32, i32
  }
  func.func @transform_1(%arg0: i32, %arg1: i32) -> (i32, i32) {
    %c0_i32 = arith.constant 0 : i32
    %c0_i32_0 = arith.constant 0 : i32
    return %c0_i32, %arg1 : i32, i32
  }
  func.func @transform_2(%arg0: i32, %arg1: i32) -> (i32, i32) {
    %c0_i32 = arith.constant 0 : i32
    %c0_i32_0 = arith.constant 0 : i32
    return %c0_i32, %arg1 : i32, i32
  }
  func.func @transform_3(%arg0: i32, %arg1: i32) -> (i32, i32) {
    %c0_i32 = arith.constant 0 : i32
    return %arg0, %arg1 : i32, i32
  }
  func.func @transform_4(%arg0: i32, %arg1: i32) -> (i32, i32) {
    %c0_i32 = arith.constant 0 : i32
    %c0_i32_0 = arith.constant 0 : i32
    return %arg0, %c0_i32 : i32, i32
  }
}

</mosaic_0001>

<llo_original>
// kernel: _generator_forward_impl.3
$region0: #{_generator_forward_impl.3}
  #allocation0 [shape = 'u32[]', space=smem, size = 0x4, offset = 0x4, fixed_abs, tag = 'smem constant byte address 0x4 - core index']
  #allocation1 [shape = 'u32[144,128]{1,0:T(1,128)}', space=vmem, size = 0x12000, scoped, tag = 'internal scratch']
  %s0 = inlined_call_operand.vmem [shape: f32[16,128], index: 0, kind: input, shape index: {}, may-alias: {0,2}]
  %s1 = inlined_call_operand.vmem [shape: f32[16,1], index: 1, kind: input, shape index: {}]
  %s2 = inlined_call_operand.vmem [shape: f32[16,128], index: 2, kind: output, shape index: {}, may-alias: {0,2}]
  %s3 = sld [smem:[#allocation0]]
  $region18: #{_generator_forward_impl.3} parent=0
    _
  %s5 = ssub.s32 1, %s3
  %s6 = scalar_select 0, %s5, %s3
  // Predicated region
  $region2: #{_generator_forward_impl.3} parent=0 // pred_check
    _
  $region3: #{_generator_forward_impl.3} parent=0 // pred_check_branch
    %8 = sbr.rel (0) target = $region5
  $region4: #{_generator_forward_impl.3} parent=0 // pred_region
    _
  $region5: #{_generator_forward_impl.3} parent=0 // pred_fallthru
    _
  // Predicated region
  $region6: #{_generator_forward_impl.3} parent=0 // pred_check
    _
  $region7: #{_generator_forward_impl.3} parent=0 // pred_check_branch
    %10 = sbr.rel (0) target = $region9
  $region8: #{_generator_forward_impl.3} parent=0 // pred_region
    _
  $region9: #{_generator_forward_impl.3} parent=0 // pred_fallthru
    _
  %v11 = vld [vmem:[%s0] sm:$0xff]
  %v12 = vld [vmem:[%s0 + $0x8] sm:$0xff]
  %v13 = vld [vmem:[%s1] sm:$0xff]
  %v14 = vld [vmem:[%s1 + $0x8] sm:$0xff]
  %16 = vset.pattern.permute.xlu0 0
  %17 = vperm.xlu0 %16, %v13
  %v18 = vpop.permute.xlu0 %17
  %21 = vset.pattern.permute.xlu0 0
  %22 = vperm.xlu0 %21, %v14
  %v23 = vpop.permute.xlu0 %22
  %v25 = vsub.f32 %v11, %v18
  %v26 = vsub.f32 %v12, %v23
  %27 = vst [vmem:[%s2] sm:$0xff] %v25
  %28 = vst [vmem:[%s2 + $0x8] sm:$0xff] %v26
  // Predicated region
  $region10: #{_generator_forward_impl.3} parent=0 // pred_check
    _
  $region11: #{_generator_forward_impl.3} parent=0 // pred_check_branch
    %30 = sbr.rel (0) target = $region13
  $region12: #{_generator_forward_impl.3} parent=0 // pred_region
    _
  $region13: #{_generator_forward_impl.3} parent=0 // pred_fallthru
    _
  // Predicated region
  $region14: #{_generator_forward_impl.3} parent=0 // pred_check
    _
  $region15: #{_generator_forward_impl.3} parent=0 // pred_check_branch
    %32 = sbr.rel (0) target = $region17
  $region16: #{_generator_forward_impl.3} parent=0 // pred_region
    _
  $region17: #{_generator_forward_impl.3} parent=0 // pred_fallthru
    _

// kernel: _generator_forward_impl.2
$region0: #{_generator_forward_impl.2}
  #allocation0 [shape = 'u32[]', space=smem, size = 0x4, offset = 0x4, fixed_abs, tag = 'smem constant byte address 0x4 - core index']
  #allocation1 [shape = 'u32[144,128]{1,0:T(1,128)}', space=vmem, size = 0x12000, scoped, tag = 'internal scratch']
  #allocation2 [shape = 'f32[16,1]{1,0:T(8,128)}', space=vmem, size = 0x2000, scoped, tag = 'scratch operand']
  #allocation3 [shape = 'f32[16,1]{1,0:T(8,128)}', space=vmem, size = 0x2000, scoped, tag = 'scratch operand']
  %s0 = inlined_call_operand.vmem [shape: bf16[16,32], index: 0, kind: input, shape index: {}]
  %s1 = inlined_call_operand.vmem [shape: bf16[32,128], index: 1, kind: input, shape index: {}]
  %s2 = inlined_call_operand.vmem [shape: f32[1,128], index: 2, kind: input, shape index: {}]
  %s3 = inlined_call_operand.vmem [shape: f32[16,128], index: 3, kind: output, shape index: {0}]
  %s4 = inlined_call_operand.vmem [shape: f32[16,1], index: 4, kind: output, shape index: {1}]
  %5 = xla_tuple %s3, %s4
  %s6 = sld [smem:[#allocation0]]
  $region38: #{_generator_forward_impl.2} parent=0
    _
  %s8 = ssub.s32 1, %s6
  %s9 = scalar_select 0, %s8, %s6
  // Predicated region
  $region2: #{_generator_forward_impl.2} parent=0 // pred_check
    _
  $region3: #{_generator_forward_impl.2} parent=0 // pred_check_branch
    %11 = sbr.rel (0) target = $region5
  $region4: #{_generator_forward_impl.2} parent=0 // pred_region
    _
  $region5: #{_generator_forward_impl.2} parent=0 // pred_fallthru
    _
  // Predicated region
  $region6: #{_generator_forward_impl.2} parent=0 // pred_check
    _
  $region7: #{_generator_forward_impl.2} parent=0 // pred_check_branch
    %13 = sbr.rel (0) target = $region9
  $region8: #{_generator_forward_impl.2} parent=0 // pred_region
    _
  $region9: #{_generator_forward_impl.2} parent=0 // pred_fallthru
    _
  // Predicated region
  $region10: #{_generator_forward_impl.2} parent=0 // pred_check
    _
  $region11: #{_generator_forward_impl.2} parent=0 // pred_check_branch
    %15 = sbr.rel (0) target = $region13
  $region12: #{_generator_forward_impl.2} parent=0 // pred_region
    _
  $region13: #{_generator_forward_impl.2} parent=0 // pred_fallthru
    _
  %p17 = scmp.eq.s32.totalorder 0, 0
  // Predicated region
  $region14: #{_generator_forward_impl.2} parent=0 // pred_check
    %p18 = pneg %p17
  $region15: #{_generator_forward_impl.2} parent=0 // pred_check_branch
    %20 = sbr.rel (%p18) target = $region17
  $region16: #{_generator_forward_impl.2} parent=0 // pred_region
    %vm21 = vcmask 7168
    %22 = vst.msk [vmem:[#allocation2] sm:$0xff] %vm21, -inf
    %23 = vst.msk [vmem:[#allocation2 + $0x8] sm:$0xff] %vm21, -inf
    %24 = vst.msk [vmem:[#allocation3] sm:$0xff] %vm21, 0.0
    %25 = vst.msk [vmem:[#allocation3 + $0x8] sm:$0xff] %vm21, 0.0
  $region17: #{_generator_forward_impl.2} parent=0 // pred_fallthru
    _
  %v26 = vld [vmem:[%s0] sm:$0xf]
  %v27 = vld [vmem:[%s0 + $0x4] sm:$0xf]
  %v28 = vld [vmem:[%s1] sm:$0xf]
  %v29 = vld [vmem:[%s1 + $0x4] sm:$0xf]
  %v30 = vld [vmem:[%s1 + $0x8] sm:$0xf]
  %v31 = vld [vmem:[%s1 + $0xc] sm:$0xf]
  %v32 = vld [vmem:[%s2] sm:$0x1]
  %v34 = vlaneseq
  %v35 = vshrl.u32 %v34, 7
  %v36 = vsub.s32 0, %v35
  %v37 = vrot.slane %v32, %v36
  %v41 = vunpack.c.l.b16 %v26
  %v42 = vunpack.c.l.b16 %v27
  %v43 = vpack.c.b16 %v42, %v41
  %v48 = vunpack.c.l.b16 %v28
  %v49 = vunpack.c.l.b16 %v29
  %v50 = vunpack.c.l.b16 %v30
  %v51 = vunpack.c.l.b16 %v31
  %v52 = vpack.c.b16 %v49, %v48
  %v53 = vpack.c.b16 %v51, %v50
  %vm56 = vcmask 261120
  %v58 = vsel %vm56, %v43, 0
  %60 = vmatprep.subr.bf16.mxu0 0
  %61 = vmatpush1.bf16.msra.mxu0 %v52
  %62 = vmatprep.subr.bf16.mxu0 0
  %63 = vmatpush1.bf16.msra.mxu0 %v53
  %64 = vmatprep.subr.bf16.mxu0 0
  %65 = vmatpush1.bf16.msra.mxu0 0
  %66 = vmatprep.subr.bf16.mxu0 0
  %67 = vmatpush1.bf16.msra.mxu0 0
  %68 = vmatprep.subr.bf16.mxu0 0
  %69 = vmatpush1.bf16.msra.mxu0 0
  %70 = vmatprep.subr.bf16.mxu0 0
  %71 = vmatpush1.bf16.msra.mxu0 0
  %72 = vmatprep.subr.bf16.mxu0 0
  %73 = vmatpush1.bf16.msra.mxu0 0
  %74 = vmatprep.subr.bf16.mxu0 0
  %75 = vmatpush1.bf16.msra.mxu0 0
  %76 = vmatprep.subr.bf16.mxu0 0
  %77 = vmatpush1.bf16.msra.mxu0 0
  %78 = vmatprep.subr.bf16.mxu0 0
  %79 = vmatpush1.bf16.msra.mxu0 0
  %80 = vmatprep.subr.bf16.mxu0 0
  %81 = vmatpush1.bf16.msra.mxu0 0
  %82 = vmatprep.subr.bf16.mxu0 0
  %83 = vmatpush1.bf16.msra.mxu0 0
  %84 = vmatprep.subr.bf16.mxu0 0
  %85 = vmatpush1.bf16.msra.mxu0 0
  %86 = vmatprep.subr.bf16.mxu0 0
  %87 = vmatpush1.bf16.msra.mxu0 0
  %88 = vmatprep.subr.bf16.mxu0 0
  %89 = vmatpush1.bf16.msra.mxu0 0
  %90 = vmatprep.subr.bf16.mxu0 0
  %91 = vmatpush1.bf16.msra.mxu0 0
  %92 = vmatprep.mubr.bf16.mxu0 0
  %93 = vmatmul.mubr.bf16.gmra.mrb[0].mxu0 %v58
  %v94 = vpop.f32.mrb[0].mxu0
  %v95 = vadd.f32 %v37, %v94
  %v96 = vpop.f32.mrb[0].mxu0
  %v97 = vpop.f32.mrb[0].mxu0
  %v98 = vadd.f32 %v37, %v97
  %v99 = vpop.f32.mrb[0].mxu0
  %100 = vdwg.mxu0
  %v101 = vld [vmem:[#allocation2] sm:$0xff]
  %v102 = vld [vmem:[#allocation2 + $0x8] sm:$0xff]
  %103 = vmax.xlane.f32.xlu0 %v95
  %v104 = vpop.xlane.xlu0 %103
  %105 = vmax.xlane.f32.xlu0 %v98
  %v106 = vpop.xlane.xlu0 %105
  %v107 = vmax.f32 %v101, %v104
  %v108 = vmax.f32 %v102, %v106
  %v109 = vld [vmem:[#allocation3] sm:$0xff]
  %v110 = vld [vmem:[#allocation3 + $0x8] sm:$0xff]
  %v111 = vsub.f32 %v101, %v107
  %v112 = vsub.f32 %v102, %v108
  %v113 = vmul.f32 %v111, 1.442695
  %v114 = vpow.pop %v113
  %v115 = vmul.f32 %v112, 1.442695
  %v116 = vpow.pop %v115
  %v117 = vmul.f32 %v109, %v114
  %v118 = vmul.f32 %v110, %v116
  %120 = vset.pattern.permute.xlu0 0
  %121 = vperm.xlu0 %120, %v107
  %v122 = vpop.permute.xlu0 %121
  %125 = vset.pattern.permute.xlu0 0
  %126 = vperm.xlu0 %125, %v108
  %v127 = vpop.permute.xlu0 %126
  %v129 = vsub.f32 %v95, %v122
  %v130 = vsub.f32 %v98, %v127
  %v131 = vmul.f32 %v129, 1.442695
  %v132 = vpow.pop %v131
  %v133 = vmul.f32 %v130, 1.442695
  %v134 = vpow.pop %v133
  %135 = vadd.xlane.f32.xlu0 %v132
  %v136 = vpop.xlane.xlu0 %135
  %137 = vadd.xlane.f32.xlu0 %v134
  %v138 = vpop.xlane.xlu0 %137
  %v139 = vadd.f32 %v117, %v136
  %v140 = vadd.f32 %v118, %v138
  %vm141 = vcmask 7168
  %142 = vst.msk [vmem:[#allocation3] sm:$0xff] %vm141, %v139
  %143 = vst.msk [vmem:[#allocation3 + $0x8] sm:$0xff] %vm141, %v140
  %144 = vst.msk [vmem:[#allocation2] sm:$0xff] %vm141, %v107
  %145 = vst.msk [vmem:[#allocation2 + $0x8] sm:$0xff] %vm141, %v108
  %146 = vst [vmem:[%s3] sm:$0xff] %v95
  %147 = vst [vmem:[%s3 + $0x8] sm:$0xff] %v98
  // Predicated region
  $region18: #{_generator_forward_impl.2} parent=0 // pred_check
    %p148 = pneg %p17
  $region19: #{_generator_forward_impl.2} parent=0 // pred_check_branch
    %150 = sbr.rel (%p148) target = $region21
  $region20: #{_generator_forward_impl.2} parent=0 // pred_region
    %v151 = vld [vmem:[#allocation2] sm:$0xff]
    %v152 = vld [vmem:[#allocation2 + $0x8] sm:$0xff]
    %v153 = vld [vmem:[#allocation3] sm:$0xff]
    %v154 = vld [vmem:[#allocation3 + $0x8] sm:$0xff]
    %v155 = vlog2.pop %v153
    %v156 = vmul.f32 %v155, 0.6931472
    %v157 = vlog2.pop %v154
    %v158 = vmul.f32 %v157, 0.6931472
    %v159 = vadd.f32 %v151, %v156
    %v160 = vadd.f32 %v152, %v158
    %161 = vst.msk [vmem:[%s4] sm:$0xff] %vm141, %v159
    %162 = vst.msk [vmem:[%s4 + $0x8] sm:$0xff] %vm141, %v160
  $region21: #{_generator_forward_impl.2} parent=0 // pred_fallthru
    _
  // Predicated region
  $region22: #{_generator_forward_impl.2} parent=0 // pred_check
    _
  $region23: #{_generator_forward_impl.2} parent=0 // pred_check_branch
    %164 = sbr.rel (0) target = $region25
  $region24: #{_generator_forward_impl.2} parent=0 // pred_region
    _
  $region25: #{_generator_forward_impl.2} parent=0 // pred_fallthru
    _
  // Predicated region
  $region26: #{_generator_forward_impl.2} parent=0 // pred_check
    _
  $region27: #{_generator_forward_impl.2} parent=0 // pred_check_branch
    %166 = sbr.rel (0) target = $region29
  $region28: #{_generator_forward_impl.2} parent=0 // pred_region
    _
  $region29: #{_generator_forward_impl.2} parent=0 // pred_fallthru
    _
  // Predicated region
  $region30: #{_generator_forward_impl.2} parent=0 // pred_check
    _
  $region31: #{_generator_forward_impl.2} parent=0 // pred_check_branch
    %168 = sbr.rel (0) target = $region33
  $region32: #{_generator_forward_impl.2} parent=0 // pred_region
    _
  $region33: #{_generator_forward_impl.2} parent=0 // pred_fallthru
    _
  // Predicated region
  $region34: #{_generator_forward_impl.2} parent=0 // pred_check
    _
  $region35: #{_generator_forward_impl.2} parent=0 // pred_check_branch
    %170 = sbr.rel (0) target = $region37
  $region36: #{_generator_forward_impl.2} parent=0 // pred_region
    _
  $region37: #{_generator_forward_impl.2} parent=0 // pred_fallthru
    _

</llo_original>
